<compile_context>
chip_gen: v7x
topology: tpu7x:2x2x1
jax: 0.10.0
libtpu: 0.0.40
codegen_flags: <defaults>
</compile_context>

<pallas_src>
import math

import jax
import jax.numpy as jnp
from jax import lax
from jax.experimental import pallas as pl
from jax.experimental.pallas import tpu as pltpu


# ----------------------------------------------------------------------------
# Buffer setup (glue) — identical math to the PyTorch __init__.
# Built ONCE in the compute dtype so the per-call path does no extra casting.
# ----------------------------------------------------------------------------
def build_positional_encoding(sequence_length: int, model_dimension: int,
                              dtype=jnp.float32) -> jnp.ndarray:
    positions = jnp.arange(sequence_length, dtype=jnp.float32)[:, None]        # (S, 1)
    divisor = jnp.exp(
        jnp.arange(0, model_dimension, 2, dtype=jnp.float32)
        / model_dimension * -math.log(10000.0)
    )                                                                           # (D/2,)
    pe = jnp.zeros((sequence_length, model_dimension), dtype=jnp.float32)
    pe = pe.at[:, 0::2].set(jnp.sin(positions * divisor))
    pe = pe.at[:, 1::2].set(jnp.cos(positions * divisor))
    return pe.astype(dtype)


# ----------------------------------------------------------------------------
# Portable in-kernel RNG: lowbias32 hash of a global element counter (int32).
# ----------------------------------------------------------------------------
def _i32(v: int):
    """Python int -> wrapped int32 constant (so >=2^31 literals don't overflow)."""
    v &= 0xFFFFFFFF
    if v >= 1 << 31:
        v -= 1 << 32
    return jnp.int32(v)


def _hash_bits_i32(x):
    """lowbias32 integer hash; int32 wrapping arithmetic + logical shifts only."""
    x = (x ^ lax.shift_right_logical(x, 16)) * _i32(0x7FEB352D)
    x = (x ^ lax.shift_right_logical(x, 15)) * _i32(0x846CA68B)
    x = x ^ lax.shift_right_logical(x, 16)
    return x


# ----------------------------------------------------------------------------
# Kernel factory
# ----------------------------------------------------------------------------
def _make_pe_kernel(p_drop: float, training: bool, *, squeeze_batch: bool,
                    TB: int, TR: int, C: int, plane: int):
    apply_dropout = training and p_drop > 0.0
    drop_all = training and p_drop >= 1.0
    if apply_dropout and not drop_all:
        # keep iff u32(bits) >= round(p*2^32). bits is uniform int32, so use a
        # shifted SIGNED threshold: P(bits >= T - 2^31) == 1 - p.
        t = int(round(p_drop * 2.0 ** 32)) - (1 << 31)
        threshold = max(-(1 << 31), min(t, (1 << 31) - 1))
        scale = 1.0 / (1.0 - p_drop)

    def kernel(seed_ref, x_ref, pe_ref, o_ref):
        if squeeze_batch:
            y = x_ref[...] + pe_ref[...]                     # (TR, C)
        else:
            y = x_ref[...] + pe_ref[...][None, :, :]         # (TB, TR, C)

        if drop_all:
            o_ref[...] = jnp.zeros(o_ref.shape, o_ref.dtype)
            return

        if apply_dropout:
            ri = pl.program_id(0)
            bi = pl.program_id(1)
            # Global element counter (wrapping int32), unique per element.
            base = (bi * _i32(TB * plane)
                    + ri * _i32(TR * C)
                    + seed_ref[0] * _i32(0x9E3779B9))
            if squeeze_batch:
                idx = (lax.broadcasted_iota(jnp.int32, (TR, C), 0) * _i32(C)
                       + lax.broadcasted_iota(jnp.int32, (TR, C), 1))
            else:
                idx = (lax.broadcasted_iota(jnp.int32, (TB, TR, C), 0) * _i32(plane)
                       + lax.broadcasted_iota(jnp.int32, (TB, TR, C), 1) * _i32(C)
                       + lax.broadcasted_iota(jnp.int32, (TB, TR, C), 2))
            bits = _hash_bits_i32(idx + base)
            keep = bits >= jnp.int32(threshold)
            # Scale in f32 (avoids bf16 rounding bias on 1/(1-p)).
            factor = jnp.where(keep, jnp.float32(scale), jnp.float32(0.0))
            y = y.astype(jnp.float32) * factor

        o_ref[...] = y.astype(o_ref.dtype)

    return kernel


# ----------------------------------------------------------------------------
# Tiling / layout selection
# ----------------------------------------------------------------------------
_SMALL_PROBLEM_BYTES = 512 << 10  # below this, one grid step is strictly faster


def _vmem_capacity_bytes() -> int:
    try:
        return int(pltpu.get_tpu_info().vmem_capacity_bytes)
    except Exception:
        return 64 << 20  # conservative default (v7x per-core VMEM)


def _sublane_rows(itemsize: int) -> int:
    # dtype-native sublane tile: f32 -> 8, bf16 -> 16, int8/fp8 -> 32
    return {4: 8, 2: 16, 1: 32}.get(itemsize, 8)


def _choose_layout(B, S, D, itemsize, target_tile_bytes):
    """Pick a lane-dense (R, C) view of (S, D) and tile sizes (TB, TR)."""
    if D % 128 == 0:
        R, C = S, D
    elif (S * D) % 128 == 0:
        R, C = (S * D) // 128, 128          # fold small D into lanes -> unmasked stores
    else:
        # TODO(synk): lane-sparse fallback (masked partial stores) for shapes
        # where D can be neither folded nor cheaply padded to a 128 multiple.
        R, C = S, D

    if B * R * C * itemsize <= _SMALL_PROBLEM_BYTES:
        return R, C, B, R                    # single grid step: block = whole array

    sub = _sublane_rows(itemsize)
    plane_bytes = R * C * itemsize
    rows = max(1, target_tile_bytes // max(1, C * itemsize))
    if rows >= R:
        # Whole plane fits under the target tile: grow the BATCH tile so each
        # grid step still moves ~target_tile_bytes (avoids tiny grid steps).
        TR = R
        TB = max(1, min(B, target_tile_bytes // max(1, plane_bytes)))
        return R, C, TB, TR

    TR = min(R, max(sub, (rows // sub) * sub))   # sublane-aligned row tiles
    if R % TR != 0:
        # Prefer a TR that divides R evenly (no masked partial final tile),
        # as long as we don't shrink below half the target.
        t = TR - sub
        while t >= max(sub, TR // 2):
            if R % t == 0:
                TR = t
                break
            t -= sub
    return R, C, 1, TR


# ----------------------------------------------------------------------------
# Forward wrapper
# ----------------------------------------------------------------------------
def positional_encoding_forward(x, pe_table, *, dropout: float = 0.0,
                                training: bool = False, seed: int = 0):
    """x: (B, S, D).  pe_table: (sequence_length, D), ideally already in x.dtype."""
    B, S, D = x.shape
    L, Dt = pe_table.shape
    assert S <= L and D == Dt
    itemsize = jnp.dtype(x.dtype).itemsize

    # PE table should be pre-built in the compute dtype; only cast on mismatch.
    pe = pe_table if pe_table.dtype == x.dtype else pe_table.astype(x.dtype)
    pe = pe if S == L else pe[:S, :]

    # Narrow, non-foldable D: pad up to 128 lanes when overhead is modest
    # (lane-dense output blocks -> unmasked stores, the biggest single lever).
    D_out = D
    if D % 128 != 0 and (S * D) % 128 != 0:
        Dp = -(-D // 128) * 128
        if Dp * 10 <= D * 13:            # <= ~30% extra traffic
            x = jnp.pad(x, ((0, 0), (0, 0), (0, Dp - D)))
            pe = jnp.pad(pe, ((0, 0), (0, Dp - D)))
            D = Dp

    # Generation-aware tile target and VMEM cap.
    vmem_bytes = _vmem_capacity_bytes()
    target_tile = int(min(8 << 20, max(2 << 20, vmem_bytes // 16)))

    R, C, TB, TR = _choose_layout(B, S, D, itemsize, target_tile)
    x3 = x.reshape(B, R, C)
    pe2 = pe.reshape(R, C)

    Rg = pl.cdiv(R, TR)
    Bg = pl.cdiv(B, TB)
    squeeze_batch = (TB == 1)

    seed_arr = jnp.array([seed], dtype=jnp.int32)
    kernel = _make_pe_kernel(float(dropout), bool(training),
                             squeeze_batch=squeeze_batch,
                             TB=TB, TR=TR, C=C, plane=R * C)

    x_block = (None, TR, C) if squeeze_batch else (TB, TR, C)

    # VMEM budget: double-buffered x & out tiles + double-buffered PE + slack,
    # capped below the physical VMEM of the running chip with headroom.
    x_tile_bytes = TB * TR * C * itemsize
    pe_tile_bytes = TR * C * itemsize
    want = 2 * 2 * x_tile_bytes + 2 * pe_tile_bytes + (2 << 20)
    vmem_cap = max(16 << 20, vmem_bytes - (16 << 20))
    vmem_limit = int(max(8 << 20, min(want, vmem_cap)))

    total_io_bytes = 2 * B * R * C * itemsize + R * C * itemsize  # x in + out + PE once

    out3 = pl.pallas_call(
        kernel,
        out_shape=jax.ShapeDtypeStruct((B, R, C), x.dtype),
        grid_spec=pltpu.PrefetchScalarGridSpec(
            num_scalar_prefetch=1,                 # seed lands in SMEM
            grid=(Rg, Bg),                         # row tiles OUTER, batch INNER
            in_specs=[
                pl.BlockSpec(x_block, lambda r, b, seed: (b, r, 0)),   # x tile
                pl.BlockSpec((TR, C), lambda r, b, seed: (r, 0)),      # PE tile (resident across batch)
            ],
            out_specs=pl.BlockSpec(x_block, lambda r, b, seed: (b, r, 0)),
        ),
        compiler_params=pltpu.CompilerParams(
            dimension_semantics=("parallel", "parallel"),
            vmem_limit_bytes=vmem_limit,
        ),
        cost_estimate=pl.CostEstimate(
            flops=B * R * C,
            transcendentals=0,
            bytes_accessed=total_io_bytes,
        ),
    )(seed_arr, x3, pe2)

    out = out3.reshape(B, S, D)
    if D_out != D:
        out = out[:, :, :D_out]
    return out


if __name__ == "__main__":
    # Small shapes consistent with the module's forward: (batch, seq, model_dim)
    model_dimension = 32
    sequence_length = 16       # buffer length (>= input seq)
    batch, seq = 2, 8
    dropout_p = 0.1

    key = jax.random.PRNGKey(0)
    x = jax.random.normal(key, (batch, seq, model_dimension), dtype=jnp.float32)
    pe_table = build_positional_encoding(sequence_length, model_dimension,
                                         dtype=x.dtype)

    # Eval mode (dropout is identity), matching nn.Dropout.eval()
    out = positional_encoding_forward(x, pe_table, dropout=dropout_p, training=False)
    out = jax.block_until_ready(out)

    ref = x + pe_table[:seq, :][None, :, :]
    assert out.shape == x.shape and out.dtype == x.dtype
    assert jnp.allclose(out, ref, atol=1e-6, rtol=1e-6)

    # Training mode: exercise the dropout path; every element must be 0 or ref/(1-p).
    out_tr = positional_encoding_forward(x, pe_table, dropout=dropout_p,
                                         training=True, seed=123)
    out_tr = jax.block_until_ready(out_tr)
    scaled = ref / (1.0 - dropout_p)
    ok = jnp.logical_or(jnp.abs(out_tr) < 1e-6, jnp.abs(out_tr - scaled) < 1e-4)
    assert bool(jnp.all(ok))

    print("KERNEL_OK")
</pallas_src>

<mosaic_0001>
module attributes {stable_mosaic.version = 11 : i64} {
  func.func @kernel(%arg0: i32, %arg1: i32, %arg2: memref<1xi32, #tpu.memory_space<smem>>, %arg3: memref<2x2x128xf32, #tpu.memory_space<vmem>>, %arg4: memref<2x128xf32, #tpu.memory_space<vmem>>, %arg5: memref<2x2x128xf32, #tpu.memory_space<vmem>>) attributes {dimension_semantics = [#tpu.dimension_semantics<parallel>, #tpu.dimension_semantics<parallel>], iteration_bounds = array<i64: 1, 1>, scalar_prefetch = 1 : i64, scratch_operands = 0 : i64, tpu.core_type = #tpu.core_type<tc>, window_params = [{transform_indices = @transform_0, window_bounds = array<i64: 2, 2, 128>}, {transform_indices = @transform_1, window_bounds = array<i64: 2, 128>}, {transform_indices = @transform_2, window_bounds = array<i64: 2, 2, 128>}]} {
    %c0 = arith.constant 0 : index
    %c0_0 = arith.constant 0 : index
    %c0_1 = arith.constant 0 : index
    %0 = vector.load %arg3[%c0, %c0_0, %c0_1] : memref<2x2x128xf32, #tpu.memory_space<vmem>>, vector<2x2x128xf32>
    %c0_2 = arith.constant 0 : index
    %c0_3 = arith.constant 0 : index
    %1 = vector.load %arg4[%c0_2, %c0_3] : memref<2x128xf32, #tpu.memory_space<vmem>>, vector<2x128xf32>
    %2 = vector.shape_cast %1 : vector<2x128xf32> to vector<1x2x128xf32>
    %3 = vector.broadcast %2 : vector<1x2x128xf32> to vector<2x2x128xf32>
    %4 = arith.addf %0, %3 : vector<2x2x128xf32>
    %c0_4 = arith.constant 0 : index
    %c0_5 = arith.constant 0 : index
    %c0_6 = arith.constant 0 : index
    %5 = vector.load %arg5[%c0_4, %c0_5, %c0_6] : memref<2x2x128xf32, #tpu.memory_space<vmem>>, vector<2x2x128xf32>
    tpu.vector_store %arg5[%c0_4, %c0_5, %c0_6], %4 {strides = array<i32>} : memref<2x2x128xf32, #tpu.memory_space<vmem>>, vector<2x2x128xf32>,
    return
  }
  func.func @transform_0(%arg0: i32, %arg1: i32, %arg2: memref<1xi32, #tpu.memory_space<smem>>) -> (i32, i32, i32) {
    %c0_i32 = arith.constant 0 : i32
    %c0_i32_0 = arith.constant 0 : i32
    return %arg1, %arg0, %c0_i32 : i32, i32, i32
  }
  func.func @transform_1(%arg0: i32, %arg1: i32, %arg2: memref<1xi32, #tpu.memory_space<smem>>) -> (i32, i32) {
    %c0_i32 = arith.constant 0 : i32
    %c0_i32_0 = arith.constant 0 : i32
    return %arg0, %c0_i32 : i32, i32
  }
  func.func @transform_2(%arg0: i32, %arg1: i32, %arg2: memref<1xi32, #tpu.memory_space<smem>>) -> (i32, i32, i32) {
    %c0_i32 = arith.constant 0 : i32
    %c0_i32_0 = arith.constant 0 : i32
    return %arg1, %arg0, %c0_i32 : i32, i32, i32
  }
}

</mosaic_0001>

<llo_original>
// kernel: tpu_custom_call.1
$region0: #{tpu_custom_call.1}
  #allocation0 [shape = 'u32[]', space=smem, size = 0x4, offset = 0x4, fixed_abs, tag = 'smem constant byte address 0x4 - core index']
  #allocation1 [shape = 'u32[144,128]{1,0:T(1,128)}', space=vmem, size = 0x12000, scoped, tag = 'internal scratch']
  #allocation2 [shape = 's32[1]{0}', space=sflag, size = 0x4, scoped, tag = 'scoped memory for tpu_custom_call.1']
  #allocation3 [shape = 's32[1]{0:T(128)S(6)}', space=smem, size = 0x200, scoped, tag = 'prefetched SMEM operand 0']
  %s0 = inlined_call_operand.<no memory space> [shape: s32[1], index: 0, kind: input, shape index: {}]
  %s1 = inlined_call_operand.hbm [shape: f32[2,2,128], index: 1, kind: input, shape index: {}]
  %s2 = inlined_call_operand.vmem [shape: f32[2,128], index: 2, kind: input, shape index: {}]
  %s3 = inlined_call_operand.hbm [shape: f32[2,2,128], index: 3, kind: output, shape index: {}]
  %s4 = sld [smem:[#allocation0]]
  $region22: #{tpu_custom_call.1} parent=0
    _
  %s6 = ssub.s32 1, %s4
  %s7 = scalar_select 0, %s6, %s4
  %8 = sst [smem:[#allocation3]] %s0
  $region1: #{tpu_custom_call.1} parent=0
    #allocation4 [shape = 'u8[2048]{0}', space=vmem, size = 0x800, scoped, tag = 'input window, operand 1, single buffered']
    #allocation5 [shape = 's32[1]{0}', space=sflag, size = 0x4, scoped, tag = 'scoped memory for tpu_custom_call.1']
    #allocation6 [shape = 's32[1]{0}', space=sflag, size = 0x4, scoped, tag = 'scoped memory for tpu_custom_call.1']
    #allocation7 [shape = 'u8[2048]{0}', space=vmem, size = 0x800, scoped, tag = 'output window, operand 0, single buffered']
    %9 = vsyncpa [#allocation5], 0
    %10 = vsyncpa [#allocation6], 0
    // Predicated region
    $region2: #{tpu_custom_call.1} parent=1 // pred_check
      _
    $region3: #{tpu_custom_call.1} parent=1 // pred_check_branch
      %12 = sbr.rel (0) target = $region5
    $region4: #{tpu_custom_call.1} parent=1 // pred_region
      %s14 = ssub.s32 64, 64
      %15 = vsyncadd [#allocation5], %s14
      %s16 = sshll.u32 [#allocation4], 4
      %s17 = int_to_ptr.vmem [resolvable:$true] %s16
      %22 = dma.hbm_to_vmem [thread:$0]  %s1, 64, %s17, [#allocation5], 32, 32, 2
    $region5: #{tpu_custom_call.1} parent=1 // pred_fallthru
      _
    // Predicated region
    $region6: #{tpu_custom_call.1} parent=1 // pred_check
      _
    $region7: #{tpu_custom_call.1} parent=1 // pred_check_branch
      %24 = sbr.rel (0) target = $region9
    $region8: #{tpu_custom_call.1} parent=1 // pred_region
      _
    $region9: #{tpu_custom_call.1} parent=1 // pred_fallthru
      _
    // Predicated region
    $region10: #{tpu_custom_call.1} parent=1 // pred_check
      _
    $region11: #{tpu_custom_call.1} parent=1 // pred_check_branch
      %26 = sbr.rel (0) target = $region13
    $region12: #{tpu_custom_call.1} parent=1 // pred_region
      %27 = dma.done [#allocation5], 64
    $region13: #{tpu_custom_call.1} parent=1 // pred_fallthru
      _
    %v28 = vld [vmem:[#allocation4] sm:$0x3]
    %v29 = vld [vmem:[#allocation4 + $0x2] sm:$0x3]
    %v30 = vld [vmem:[%s2] sm:$0x3]
    %v31 = vadd.f32 %v28, %v30
    %v32 = vadd.f32 %v29, %v30
    %33 = vst [vmem:[#allocation7] sm:$0x3] %v31
    %34 = vst [vmem:[#allocation7 + $0x2] sm:$0x3] %v32
    // Predicated region
    $region14: #{tpu_custom_call.1} parent=1 // pred_check
      _
    $region15: #{tpu_custom_call.1} parent=1 // pred_check_branch
      %36 = sbr.rel (0) target = $region17
    $region16: #{tpu_custom_call.1} parent=1 // pred_region
      %s38 = ssub.s32 64, 64
      %39 = vsyncadd [#allocation6], %s38
      %s40 = sshll.u32 [#allocation7], 4
      %s41 = int_to_ptr.vmem [resolvable:$true] %s40
      %46 = dma.vmem_to_hbm [thread:$0]  %s41, 64, %s3, [#allocation6], 32, 32, 2
    $region17: #{tpu_custom_call.1} parent=1 // pred_fallthru
      _
    // Predicated region
    $region18: #{tpu_custom_call.1} parent=1 // pred_check
      _
    $region19: #{tpu_custom_call.1} parent=1 // pred_check_branch
      %48 = sbr.rel (0) target = $region21
    $region20: #{tpu_custom_call.1} parent=1 // pred_region
      %49 = dma.done [#allocation6], 64
    $region21: #{tpu_custom_call.1} parent=1 // pred_fallthru
      _
    %50 = vsyncpa [#allocation5], 1
    %51 = vsyncpa [#allocation6], 1

</llo_original>
